<compile_context>
chip_gen: v6e
topology: v6e:2x2x1
jax: 0.10.0
libtpu: 0.0.40
codegen_flags: <defaults>
</compile_context>

<pallas_src>
import functools

import jax
import jax.numpy as jnp
from jax.experimental import pallas as pl
from jax.experimental.pallas import tpu as pltpu


def _var_kernel(ln_inv_s_ref, out_ref, *, factor: float):
    # ln_inv_s_ref : SMEM (1,)   f32 -- the learned parameter (scalar read)
    # out_ref      : VMEM (1, 1) f32 -- exp(ln_inv_s * factor)
    s = ln_inv_s_ref[0] * factor                      # scalar ALU (sld + smul)
    vec = jnp.full(out_ref.shape, s, dtype=jnp.float32)  # scalar -> vreg bcast
    out_ref[...] = jnp.exp(vec)                       # EUP exp on one vreg


def var_single_learned_forward(ln_inv_s: jax.Array,
                               ln_inv_s_factor: float) -> jax.Array:
    """Pallas equivalent of VarSingleLearned.forward().

    Args:
      ln_inv_s: learned parameter, shape (1,), float32 (same layout as the
        nn.Parameter; no reshape/astype needed at the boundary).
      ln_inv_s_factor: python float, fixed at module construction.

    Returns:
      exp(ln_inv_s * ln_inv_s_factor), shape (1,), float32 (matches PyTorch).
    """
    out_2d = pl.pallas_call(
        functools.partial(_var_kernel, factor=float(ln_inv_s_factor)),
        out_shape=jax.ShapeDtypeStruct((1, 1), jnp.float32),
        in_specs=[pl.BlockSpec(memory_space=pltpu.MemorySpace.SMEM)],
        out_specs=pl.BlockSpec(memory_space=pltpu.MemorySpace.VMEM),
    )(ln_inv_s)
    return out_2d.reshape(1)


def var_single_learned_forward_ref(ln_inv_s: jax.Array,
                                   ln_inv_s_factor: float) -> jax.Array:
    """Recommended production path: plain jnp, fully fusible by XLA."""
    return jnp.exp(ln_inv_s * ln_inv_s_factor).reshape(1)


if __name__ == "__main__":
    # Deterministic parameter init mirroring nn.Parameter(torch.tensor([init])).
    ln_inv_s_init = 0.3
    ln_inv_s_factor = 10.0

    _ = jax.random.PRNGKey(0)  # init is deterministic; key kept for convention
    ln_inv_s = jnp.full((1,), ln_inv_s_init, dtype=jnp.float32)

    out = var_single_learned_forward(ln_inv_s, ln_inv_s_factor)
    out = jax.block_until_ready(out)

    # Reference check against plain JAX (the path that should actually ship).
    ref = var_single_learned_forward_ref(ln_inv_s, ln_inv_s_factor)
    assert out.shape == (1,)
    assert out.dtype == jnp.float32
    assert bool(jnp.allclose(out, ref, rtol=1e-6, atol=1e-6))

    print("KERNEL_OK")
</pallas_src>

<mosaic_0001>
module attributes {stable_mosaic.version = 11 : i64} {
  func.func @_var_kernel(%arg0: memref<1xf32, #tpu.memory_space<smem>>, %arg1: memref<1x1xf32, #tpu.memory_space<vmem>>) attributes {dimension_semantics = [], scalar_prefetch = 0 : i64, scratch_operands = 0 : i64, tpu.core_type = #tpu.core_type<tc>} {
    %c0 = arith.constant 0 : index
    %0 = memref.load %arg0[%c0] : memref<1xf32, #tpu.memory_space<smem>>
    %cst = arith.constant 1.000000e+01 : f32
    %1 = arith.mulf %0, %cst : f32
    %2 = vector.broadcast %1 : f32 to vector<1x1xf32>
    %3 = math.exp %2 : vector<1x1xf32>
    %c0_0 = arith.constant 0 : index
    %c0_1 = arith.constant 0 : index
    %4 = vector.load %arg1[%c0_0, %c0_1] : memref<1x1xf32, #tpu.memory_space<vmem>>, vector<1x1xf32>
    tpu.vector_store %arg1[%c0_0, %c0_1], %3 {strides = array<i32>} : memref<1x1xf32, #tpu.memory_space<vmem>>, vector<1x1xf32>,
    return
  }
}

</mosaic_0001>

<llo_original>
// kernel: tpu_custom_call.1
$region0: #{tpu_custom_call.1}
  #allocation0 [shape = 'u32[]', space=smem, size = 0x4, offset = 0x4, fixed_abs, tag = 'smem constant byte address 0x4 - core index']
  #allocation1 [shape = 'u32[144,128]{1,0:T(1,128)}', space=vmem, size = 0x12000, scoped, tag = 'internal scratch']
  #allocation2 [shape = 'f32[1]{0:T(128)S(6)}', space=smem, size = 0x200, scoped, tag = 'scoped memory for tpu_custom_call.1']
  %s0 = inlined_call_operand.<no memory space> [shape: f32[1], index: 0, kind: input, shape index: {}]
  %s1 = inlined_call_operand.hbm [shape: f32[1,1], index: 1, kind: output, shape index: {}]
  %s2 = sld [smem:[#allocation0]]
  $region14: #{tpu_custom_call.1} parent=0
    _
  %s4 = ssub.s32 1, %s2
  %s5 = scalar_select 0, %s4, %s2
  %6 = sst [smem:[#allocation2]] %s0
  $region1: #{tpu_custom_call.1} parent=0
    #allocation3 [shape = 'u8[512]{0}', space=vmem, size = 0x400, scoped, tag = 'output window, operand 0, single buffered']
    #allocation4 [shape = 's32[1]{0}', space=sflag, size = 0x4, scoped, tag = 'scoped memory for tpu_custom_call.1']
    %7 = vsyncpa [#allocation4], 0
    // Predicated region
    $region2: #{tpu_custom_call.1} parent=1 // pred_check
      _
    $region3: #{tpu_custom_call.1} parent=1 // pred_check_branch
      %9 = sbr.rel (0) target = $region5
    $region4: #{tpu_custom_call.1} parent=1 // pred_region
      _
    $region5: #{tpu_custom_call.1} parent=1 // pred_fallthru
      _
    %s10 = sld [smem:[#allocation2]]
    %s11 = smul.f32 %s10, 10.0
    %v12 = vstv %s11
    %v13 = vmul.f32 %v12, 1.442695
    %v14 = vpow.pop %v13
    %vm15 = vcmask 0
    %16 = vst.msk [vmem:[#allocation3] sm:$0x1] %vm15, %v14
    // Predicated region
    $region6: #{tpu_custom_call.1} parent=1 // pred_check
      _
    $region7: #{tpu_custom_call.1} parent=1 // pred_check_branch
      %18 = sbr.rel (0) target = $region9
    $region8: #{tpu_custom_call.1} parent=1 // pred_region
      %s20 = ssub.s32 16, 16
      %21 = vsyncadd [#allocation4], %s20
      %s23 = sshll.u32 [#allocation3], 4
      %s24 = int_to_ptr.vmem [resolvable:$true] %s23
      %26 = dma.vmem_to_hbm [thread:$0]  %s24, 16, %s1, [#allocation4]
    $region9: #{tpu_custom_call.1} parent=1 // pred_fallthru
      _
    // Predicated region
    $region10: #{tpu_custom_call.1} parent=1 // pred_check
      _
    $region11: #{tpu_custom_call.1} parent=1 // pred_check_branch
      %28 = sbr.rel (0) target = $region13
    $region12: #{tpu_custom_call.1} parent=1 // pred_region
      %29 = dma.done [#allocation4], 16
    $region13: #{tpu_custom_call.1} parent=1 // pred_fallthru
      _
    %30 = vsyncpa [#allocation4], 1

</llo_original>
